<compile_context>
chip_gen: v5e
topology: v5e:2x2
jax: 0.10.0
libtpu: 0.0.40
codegen_flags: <defaults>
</compile_context>

<pallas_src>
import functools
import math

import jax
import jax.numpy as jnp
from jax import lax
from jax.experimental import pallas as pl
from jax.experimental.pallas import tpu as pltpu


# "A @ B.T" without materializing B.T: contract both operands' last axes.
_DN_ABT = (((1,), (1,)), ((), ()))


def qkv_projection_kernel(x_ref, wq_ref, wk_ref, wv_ref, q_ref, k_ref, v_ref, *,
                          scale):
    """One S-tile of the qkv Linear (no bias).

    bf16 MXU operands, f32 accumulation; the 1/sqrt(D_out) scale is folded into
    q here (an (S, D) multiply instead of an (S, S) one later).
    """
    x = x_ref[...].astype(jnp.bfloat16)
    q = lax.dot_general(x, wq_ref[...], _DN_ABT, preferred_element_type=jnp.float32)
    k = lax.dot_general(x, wk_ref[...], _DN_ABT, preferred_element_type=jnp.float32)
    v = lax.dot_general(x, wv_ref[...], _DN_ABT, preferred_element_type=jnp.float32)
    q_ref[...] = (q * scale).astype(q_ref.dtype)
    k_ref[...] = k.astype(k_ref.dtype)
    v_ref[...] = v.astype(v_ref.dtype)


def flash_attention_kernel(q_ref, k_ref, v_ref, o_ref, m_scr, l_scr, acc_scr):
    """Grid = (num_q_blocks, num_kv_blocks); KV axis is the online-softmax reduction."""
    ki = pl.program_id(1)

    @pl.when(ki == 0)
    def _init():
        m_scr[...] = jnp.full_like(m_scr, -jnp.inf)
        l_scr[...] = jnp.zeros_like(l_scr)
        acc_scr[...] = jnp.zeros_like(acc_scr)

    # scores = (q * scale) @ k.T : bf16 MXU operands, f32 accumulation, no
    # transpose materialized (contraction over the shared D_out axis).
    s = lax.dot_general(q_ref[...], k_ref[...], _DN_ABT,
                        preferred_element_type=jnp.float32)          # (tq, tk) f32

    # Online (flash-style) softmax update; all running state stays in f32.
    m_prev = m_scr[...]
    m_new = jnp.maximum(m_prev, jnp.max(s, axis=-1, keepdims=True))
    alpha = jnp.exp(m_prev - m_new)
    # exp computed in f32 (portable to v5e: no bf16 EUP/VPU); the result is cast
    # to bf16 only as the MXU operand of p @ v.
    p = jnp.exp(s - m_new)
    l_scr[...] = alpha * l_scr[...] + jnp.sum(p, axis=-1, keepdims=True)
    acc_scr[...] = alpha * acc_scr[...] + jnp.dot(
        p.astype(jnp.bfloat16), v_ref[...], preferred_element_type=jnp.float32)
    m_scr[...] = m_new

    @pl.when(ki == pl.num_programs(1) - 1)
    def _finalize():
        # Exact divide: runs once per query tile on a (block_q, 1) tensor -> free.
        o_ref[...] = (acc_scr[...] / l_scr[...]).astype(o_ref.dtype)


def classical_attention(x, w_qkv, size_out, *, block_q=256, block_kv=256,
                        block_proj=256, vmem_limit_bytes=64 * 1024 * 1024):
    """x: (S, D_in); w_qkv: (3*D_out, D_in) exactly as nn.Linear.weight (no transpose)."""
    S, D_in = x.shape
    assert w_qkv.shape == (3 * size_out, D_in)
    block_q = min(block_q, S)
    block_kv = min(block_kv, S)
    block_proj = min(block_proj, S)
    assert S % block_q == 0 and S % block_kv == 0 and S % block_proj == 0

    # Split the fused qkv weight into the three projections (reshape + leading-
    # axis slice, no transpose / HBM re-layout) and cast once to bf16 for the MXU.
    w3 = w_qkv.reshape(3, size_out, D_in)
    wq = w3[0].astype(jnp.bfloat16)
    wk = w3[1].astype(jnp.bfloat16)
    wv = w3[2].astype(jnp.bfloat16)

    scale = 1.0 / math.sqrt(float(size_out))

    def weight_spec():
        # Grid-invariant weights: single-buffered (double-buffering buys nothing).
        return pl.BlockSpec((size_out, D_in), lambda i: (0, 0),
                            pipeline_mode=pl.Buffered(1))

    # ---------------- Stage 1: QKV projection (computed once over S) ----------
    q, k, v = pl.pallas_call(
        functools.partial(qkv_projection_kernel, scale=scale),
        out_shape=(
            jax.ShapeDtypeStruct((S, size_out), jnp.bfloat16),   # q (pre-scaled)
            jax.ShapeDtypeStruct((S, size_out), jnp.bfloat16),   # k
            jax.ShapeDtypeStruct((S, size_out), jnp.bfloat16),   # v
        ),
        grid=(S // block_proj,),
        in_specs=[
            pl.BlockSpec((block_proj, D_in), lambda i: (i, 0)),
            weight_spec(),
            weight_spec(),
            weight_spec(),
        ],
        out_specs=(
            pl.BlockSpec((block_proj, size_out), lambda i: (i, 0)),
            pl.BlockSpec((block_proj, size_out), lambda i: (i, 0)),
            pl.BlockSpec((block_proj, size_out), lambda i: (i, 0)),
        ),
        compiler_params=pltpu.CompilerParams(
            dimension_semantics=("parallel",),
            vmem_limit_bytes=vmem_limit_bytes),
    )(x, wq, wk, wv)

    # ---------------- Stage 2: flash attention over Q/K/V --------------------
    out = pl.pallas_call(
        flash_attention_kernel,
        out_shape=jax.ShapeDtypeStruct((S, size_out), x.dtype),
        grid=(S // block_q, S // block_kv),
        in_specs=[
            pl.BlockSpec((block_q, size_out), lambda qi, ki: (qi, 0)),
            pl.BlockSpec((block_kv, size_out), lambda qi, ki: (ki, 0)),
            pl.BlockSpec((block_kv, size_out), lambda qi, ki: (ki, 0)),
        ],
        out_specs=pl.BlockSpec((block_q, size_out), lambda qi, ki: (qi, 0)),
        scratch_shapes=[
            pltpu.VMEM((block_q, 1), jnp.float32),          # running max m
            pltpu.VMEM((block_q, 1), jnp.float32),          # running denom l
            pltpu.VMEM((block_q, size_out), jnp.float32),   # output accumulator
        ],
        compiler_params=pltpu.CompilerParams(
            # query tiles independent -> megacore-sharded on v7x;
            # KV axis is the softmax reduction -> arbitrary, last.
            dimension_semantics=("parallel", "arbitrary"),
            vmem_limit_bytes=vmem_limit_bytes),
    )(q, k, v)
    return out


def reference(x, w_qkv, size_out):
    qkv = x @ w_qkv.T
    q = qkv[:, :size_out]
    k = qkv[:, size_out:2 * size_out]
    v = qkv[:, 2 * size_out:]
    scores = (q @ k.T) / math.sqrt(size_out)
    return jax.nn.softmax(scores, axis=-1) @ v


if __name__ == "__main__":
    # Small but tiling-exercising shapes: projection grid of 2 tiles and a 2x2
    # attention grid; lane-dense (128-multiple) feature dims, D_in >= 128 so the
    # MXU contraction is fully fed.
    S, size_in, size_out = 256, 128, 128

    key = jax.random.PRNGKey(0)
    kx, kw = jax.random.split(key)

    x = jax.random.normal(kx, (S, size_in), dtype=jnp.float32)
    # Deterministic init mimicking nn.Linear default (uniform +/- 1/sqrt(fan_in)).
    bound = 1.0 / math.sqrt(size_in)
    w_qkv = jax.random.uniform(kw, (3 * size_out, size_in),
                               dtype=jnp.float32, minval=-bound, maxval=bound)

    out = classical_attention(x, w_qkv, size_out,
                              block_q=128, block_kv=128, block_proj=128)
    out = jax.block_until_ready(out)

    ref = reference(x, w_qkv, size_out)
    assert out.shape == (S, size_out)
    # Tolerance reflects bf16 MXU operands (per the perf review); the softmax
    # state and all accumulations remain f32, and the finalize uses an exact divide.
    err = jnp.max(jnp.abs(out - ref))
    assert jnp.allclose(out, ref, atol=2e-2, rtol=2e-2), f"max abs err {err}"

    print("KERNEL_OK")
</pallas_src>

<mosaic_0001>
module attributes {stable_mosaic.version = 11 : i64} {
  func.func @qkv_projection_kernel(%arg0: i32, %arg1: memref<128x128xf32, #tpu.memory_space<vmem>>, %arg2: memref<128x128xbf16, #tpu.memory_space<vmem>>, %arg3: memref<128x128xbf16, #tpu.memory_space<vmem>>, %arg4: memref<128x128xbf16, #tpu.memory_space<vmem>>, %arg5: memref<128x128xbf16, #tpu.memory_space<vmem>>, %arg6: memref<128x128xbf16, #tpu.memory_space<vmem>>, %arg7: memref<128x128xbf16, #tpu.memory_space<vmem>>) attributes {dimension_semantics = [#tpu.dimension_semantics<parallel>], iteration_bounds = array<i64: 2>, scalar_prefetch = 0 : i64, scratch_operands = 0 : i64, tpu.core_type = #tpu.core_type<tc>, window_params = [{transform_indices = @transform_0, window_bounds = array<i64: 128, 128>}, {pipeline_mode = #tpu.pipeline_mode<synchronous>, transform_indices = @transform_1, window_bounds = array<i64: 128, 128>}, {pipeline_mode = #tpu.pipeline_mode<synchronous>, transform_indices = @transform_2, window_bounds = array<i64: 128, 128>}, {pipeline_mode = #tpu.pipeline_mode<synchronous>, transform_indices = @transform_3, window_bounds = array<i64: 128, 128>}, {transform_indices = @transform_4, window_bounds = array<i64: 128, 128>}, {transform_indices = @transform_5, window_bounds = array<i64: 128, 128>}, {transform_indices = @transform_6, window_bounds = array<i64: 128, 128>}]} {
    %c0 = arith.constant 0 : index
    %c0_0 = arith.constant 0 : index
    %0 = vector.load %arg1[%c0, %c0_0] : memref<128x128xf32, #tpu.memory_space<vmem>>, vector<128x128xf32>
    %1 = arith.truncf %0 : vector<128x128xf32> to vector<128x128xbf16>
    %c0_1 = arith.constant 0 : index
    %c0_2 = arith.constant 0 : index
    %2 = vector.load %arg2[%c0_1, %c0_2] : memref<128x128xbf16, #tpu.memory_space<vmem>>, vector<128x128xbf16>
    %cst = arith.constant dense<0.000000e+00> : vector<128x128xf32>
    %3 = tpu.matmul %1, %2, %cst {dimension_numbers = #tpu.dot_dimension_numbers<[1], [1], [0], [0], [0, 0, 1, 0], [], []>} : vector<128x128xbf16>, vector<128x128xbf16>, vector<128x128xf32> -> vector<128x128xf32>
    %c0_3 = arith.constant 0 : index
    %c0_4 = arith.constant 0 : index
    %4 = vector.load %arg3[%c0_3, %c0_4] : memref<128x128xbf16, #tpu.memory_space<vmem>>, vector<128x128xbf16>
    %cst_5 = arith.constant dense<0.000000e+00> : vector<128x128xf32>
    %5 = tpu.matmul %1, %4, %cst_5 {dimension_numbers = #tpu.dot_dimension_numbers<[1], [1], [0], [0], [0, 0, 1, 0], [], []>} : vector<128x128xbf16>, vector<128x128xbf16>, vector<128x128xf32> -> vector<128x128xf32>
    %c0_6 = arith.constant 0 : index
    %c0_7 = arith.constant 0 : index
    %6 = vector.load %arg4[%c0_6, %c0_7] : memref<128x128xbf16, #tpu.memory_space<vmem>>, vector<128x128xbf16>
    %cst_8 = arith.constant dense<0.000000e+00> : vector<128x128xf32>
    %7 = tpu.matmul %1, %6, %cst_8 {dimension_numbers = #tpu.dot_dimension_numbers<[1], [1], [0], [0], [0, 0, 1, 0], [], []>} : vector<128x128xbf16>, vector<128x128xbf16>, vector<128x128xf32> -> vector<128x128xf32>
    %cst_9 = arith.constant 0.0883883461 : f32
    %8 = vector.broadcast %cst_9 : f32 to vector<128x128xf32>
    %9 = arith.mulf %3, %8 : vector<128x128xf32>
    %10 = arith.truncf %9 : vector<128x128xf32> to vector<128x128xbf16>
    %c0_10 = arith.constant 0 : index
    %c0_11 = arith.constant 0 : index
    %11 = vector.load %arg5[%c0_10, %c0_11] : memref<128x128xbf16, #tpu.memory_space<vmem>>, vector<128x128xbf16>
    tpu.vector_store %arg5[%c0_10, %c0_11], %10 {strides = array<i32>} : memref<128x128xbf16, #tpu.memory_space<vmem>>, vector<128x128xbf16>,
    %12 = arith.truncf %5 : vector<128x128xf32> to vector<128x128xbf16>
    %c0_12 = arith.constant 0 : index
    %c0_13 = arith.constant 0 : index
    %13 = vector.load %arg6[%c0_12, %c0_13] : memref<128x128xbf16, #tpu.memory_space<vmem>>, vector<128x128xbf16>
    tpu.vector_store %arg6[%c0_12, %c0_13], %12 {strides = array<i32>} : memref<128x128xbf16, #tpu.memory_space<vmem>>, vector<128x128xbf16>,
    %14 = arith.truncf %7 : vector<128x128xf32> to vector<128x128xbf16>
    %c0_14 = arith.constant 0 : index
    %c0_15 = arith.constant 0 : index
    %15 = vector.load %arg7[%c0_14, %c0_15] : memref<128x128xbf16, #tpu.memory_space<vmem>>, vector<128x128xbf16>
    tpu.vector_store %arg7[%c0_14, %c0_15], %14 {strides = array<i32>} : memref<128x128xbf16, #tpu.memory_space<vmem>>, vector<128x128xbf16>,
    return
  }
  func.func @transform_0(%arg0: i32) -> (i32, i32) {
    %c0_i32 = arith.constant 0 : i32
    %c0_i32_0 = arith.constant 0 : i32
    return %arg0, %c0_i32 : i32, i32
  }
  func.func @transform_1(%arg0: i32) -> (i32, i32) {
    %c0_i32 = arith.constant 0 : i32
    %c0_i32_0 = arith.constant 0 : i32
    %c0_i32_1 = arith.constant 0 : i32
    return %c0_i32, %c0_i32_0 : i32, i32
  }
  func.func @transform_2(%arg0: i32) -> (i32, i32) {
    %c0_i32 = arith.constant 0 : i32
    %c0_i32_0 = arith.constant 0 : i32
    %c0_i32_1 = arith.constant 0 : i32
    return %c0_i32, %c0_i32_0 : i32, i32
  }
  func.func @transform_3(%arg0: i32) -> (i32, i32) {
    %c0_i32 = arith.constant 0 : i32
    %c0_i32_0 = arith.constant 0 : i32
    %c0_i32_1 = arith.constant 0 : i32
    return %c0_i32, %c0_i32_0 : i32, i32
  }
  func.func @transform_4(%arg0: i32) -> (i32, i32) {
    %c0_i32 = arith.constant 0 : i32
    %c0_i32_0 = arith.constant 0 : i32
    return %arg0, %c0_i32 : i32, i32
  }
  func.func @transform_5(%arg0: i32) -> (i32, i32) {
    %c0_i32 = arith.constant 0 : i32
    %c0_i32_0 = arith.constant 0 : i32
    return %arg0, %c0_i32 : i32, i32
  }
  func.func @transform_6(%arg0: i32) -> (i32, i32) {
    %c0_i32 = arith.constant 0 : i32
    %c0_i32_0 = arith.constant 0 : i32
    return %arg0, %c0_i32 : i32, i32
  }
}

</mosaic_0001>

<llo_original>
// kernel: tpu_custom_call.1
$region0: #{tpu_custom_call.1}
  #allocation0 [shape = 'u32[]', space=smem, size = 0x4, offset = 0x4, fixed_abs, tag = 'smem constant byte address 0x4 - core index']
  #allocation1 [shape = 'u32[72,128]{1,0:T(1,128)}', space=vmem, size = 0x9000, scoped, tag = 'internal scratch']
  %s0 = inlined_call_operand.hbm [shape: f32[256,128], index: 0, kind: input, shape index: {}]
  %s1 = inlined_call_operand.hbm [shape: bf16[128,128], index: 1, kind: input, shape index: {}]
  %s2 = inlined_call_operand.hbm [shape: bf16[128,128], index: 2, kind: input, shape index: {}]
  %s3 = inlined_call_operand.hbm [shape: bf16[128,128], index: 3, kind: input, shape index: {}]
  %s4 = inlined_call_operand.hbm [shape: bf16[256,128], index: 4, kind: output, shape index: {0}]
  %s5 = inlined_call_operand.hbm [shape: bf16[256,128], index: 5, kind: output, shape index: {1}]
  %s6 = inlined_call_operand.hbm [shape: bf16[256,128], index: 6, kind: output, shape index: {2}]
  %7 = xla_tuple %s4, %s5, %s6
  %s8 = sld [smem:[#allocation0]]
  $region81: #{tpu_custom_call.1} parent=0
    _
  %s10 = ssub.s32 1, %s8
  %s11 = scalar_select 0, %s10, %s8
  $region1: #{tpu_custom_call.1} parent=0
    #allocation2 [shape = 'u8[131072]{0}', space=vmem, size = 0x20000, scoped, tag = 'input window, operand 0']
    #allocation3 [shape = 's32[2]{0}', space=sflag, size = 0x8, scoped, tag = 'scoped memory for tpu_custom_call.1']
    #allocation4 [shape = 's32[2]{0}', space=sflag, size = 0x8, scoped, tag = 'scoped memory for tpu_custom_call.1']
    #allocation5 [shape = 'u8[32768]{0}', space=vmem, size = 0x8000, scoped, tag = 'input window, operand 1, single buffered']
    #allocation6 [shape = 's32[1]{0}', space=sflag, size = 0x4, scoped, tag = 'scoped memory for tpu_custom_call.1']
    #allocation7 [shape = 'u8[32768]{0}', space=vmem, size = 0x8000, scoped, tag = 'input window, operand 2, single buffered']
    #allocation8 [shape = 'u8[32768]{0}', space=vmem, size = 0x8000, scoped, tag = 'input window, operand 3, single buffered']
    #allocation9 [shape = 's32[1]{0}', space=sflag, size = 0x4, scoped, tag = 'scoped memory for tpu_custom_call.1']
    #allocation10 [shape = 'u8[65536]{0}', space=vmem, size = 0x10000, scoped, tag = 'output window, operand 0']
    #allocation11 [shape = 'u8[65536]{0}', space=vmem, size = 0x10000, scoped, tag = 'output window, operand 1']
    #allocation12 [shape = 's32[2]{0}', space=sflag, size = 0x8, scoped, tag = 'scoped memory for tpu_custom_call.1']
    #allocation13 [shape = 'u8[65536]{0}', space=vmem, size = 0x10000, scoped, tag = 'output window, operand 2']
    %12 = vsyncpa [#allocation3], 0
    %s13 = scalar_lea.sflag [#allocation3], 1
    %14 = vsyncpa %s13, 0
    %15 = vsyncpa [#allocation6], 0
    %16 = vsyncpa [#allocation9], 0
    %17 = vsyncpa [#allocation4], 0
    %s18 = scalar_lea.sflag [#allocation4], 1
    %19 = vsyncpa %s18, 0
    %20 = vsyncpa [#allocation12], 0
    %s21 = scalar_lea.sflag [#allocation12], 1
    %22 = vsyncpa %s21, 0
    loop: start=0, step=1, limit=4
    $region2: #{tpu_custom_call.1} parent=1 // loop_pre_header
      _
    $region3: #{tpu_custom_call.1} parent=1 // loop_header
      %s24 = sphi 0, %s28
      %p25 = scmp.ge.s32.totalorder %s24, 4
      %s34 = sphi 0, %s36
      %s37 = sphi 0, %s34
      %s38 = sphi 0, %s37
      %s54 = sphi 0, %s38
      %s58 = sphi 0, %s58
      %s60 = sphi 0, %s58
      %s61 = sphi 0, %s60
      %s75 = sphi 0, %s61
      %s79 = sphi 0, %s79
      %s81 = sphi 0, %s79
      %s82 = sphi 0, %s81
      %s96 = sphi 0, %s82
      %s100 = sphi 0, %s100
      %s102 = sphi 0, %s100
      %s103 = sphi 0, %s102
      %s117 = sphi 0, %s103
      %s123 = sphi 0, %s125
      %s126 = sphi 0, %s123
      %s127 = sphi 0, %s126
      %s143 = sphi 0, %s127
      %s149 = sphi 0, %s151
      %s152 = sphi 0, %s149
      %s153 = sphi 0, %s152
      %s169 = sphi 0, %s153
      %s175 = sphi 0, %s177
      %s178 = sphi 0, %s175
      %s179 = sphi 0, %s178
      %s195 = sphi 0, %s179
    $region4: #{tpu_custom_call.1} parent=1 // loop_header_branch
      %27 = sbr.rel (%p25) target = $region8
    $region5: #{tpu_custom_call.1} parent=1 // loop_body
      %s29 = ssub.s32 %s24, 1
      %s30 = ssub.s32 %s24, 2
      %s31 = sadd.s32 %s24, 1
      %s32 = ssub.s32 %s24, %s31
      %p33 = scmp.eq.s32.totalorder %s32, 0
      %s35 = sadd.s32 %s34, 1
      %s36 = scalar_select %p33, %s34, %s35
      %p39 = pneg %p33
      %p40 = scmp.eq.s32.totalorder %s24, 1
      %p41 = por %p39, %p40
      %p42 = scmp.ne.s32.totalorder %s34, %s37
      %p43 = scmp.eq.s32.totalorder %s24, 0
      %p44 = por %p42, %p43
      %p45 = scmp.ne.s32.totalorder %s34, %s37
      %p46 = scmp.eq.s32.totalorder %s29, 1
      %p47 = por %p45, %p46
      %p48 = scmp.ne.s32.totalorder %s37, %s38
      %p49 = scmp.eq.s32.totalorder %s29, 0
      %p50 = por %p48, %p49
      %p51 = scmp.ne.s32.totalorder %s37, %s38
      %p52 = scmp.eq.s32.totalorder %s30, 1
      %p53 = por %p51, %p52
      %p55 = scmp.ne.s32.totalorder %s38, %s54
      %p56 = scmp.eq.s32.totalorder %s30, 0
      %p57 = por %p55, %p56
      %s59 = sadd.s32 %s58, 1
      %p62 = scmp.eq.s32.totalorder %s24, 1
      %p63 = scmp.ne.s32.totalorder %s58, %s60
      %p64 = scmp.eq.s32.totalorder %s24, 0
      %p65 = por %p63, %p64
      %p66 = scmp.ne.s32.totalorder %s58, %s60
      %p67 = scmp.eq.s32.totalorder %s29, 1
      %p68 = por %p66, %p67
      %p69 = scmp.ne.s32.totalorder %s60, %s61
      %p70 = scmp.eq.s32.totalorder %s29, 0
      %p71 = por %p69, %p70
      %p72 = scmp.ne.s32.totalorder %s60, %s61
      %p73 = scmp.eq.s32.totalorder %s30, 1
      %p74 = por %p72, %p73
      %p76 = scmp.ne.s32.totalorder %s61, %s75
      %p77 = scmp.eq.s32.totalorder %s30, 0
      %p78 = por %p76, %p77
      %s80 = sadd.s32 %s79, 1
      %p83 = scmp.eq.s32.totalorder %s24, 1
      %p84 = scmp.ne.s32.totalorder %s79, %s81
      %p85 = scmp.eq.s32.totalorder %s24, 0
      %p86 = por %p84, %p85
      %p87 = scmp.ne.s32.totalorder %s79, %s81
      %p88 = scmp.eq.s32.totalorder %s29, 1
      %p89 = por %p87, %p88
      %p90 = scmp.ne.s32.totalorder %s81, %s82
      %p91 = scmp.eq.s32.totalorder %s29, 0
      %p92 = por %p90, %p91
      %p93 = scmp.ne.s32.totalorder %s81, %s82
      %p94 = scmp.eq.s32.totalorder %s30, 1
      %p95 = por %p93, %p94
      %p97 = scmp.ne.s32.totalorder %s82, %s96
      %p98 = scmp.eq.s32.totalorder %s30, 0
      %p99 = por %p97, %p98
      %s101 = sadd.s32 %s100, 1
      %p104 = scmp.eq.s32.totalorder %s24, 1
      %p105 = scmp.ne.s32.totalorder %s100, %s102
      %p106 = scmp.eq.s32.totalorder %s24, 0
      %p107 = por %p105, %p106
      %p108 = scmp.ne.s32.totalorder %s100, %s102
      %p109 = scmp.eq.s32.totalorder %s29, 1
      %p110 = por %p108, %p109
      %p111 = scmp.ne.s32.totalorder %s102, %s103
      %p112 = scmp.eq.s32.totalorder %s29, 0
      %p113 = por %p111, %p112
      %p114 = scmp.ne.s32.totalorder %s102, %s103
      %p115 = scmp.eq.s32.totalorder %s30, 1
      %p116 = por %p114, %p115
      %p118 = scmp.ne.s32.totalorder %s103, %s117
      %p119 = scmp.eq.s32.totalorder %s30, 0
      %p120 = por %p118, %p119
      %s121 = ssub.s32 %s24, %s31
      %p122 = scmp.eq.s32.totalorder %s121, 0
      %s124 = sadd.s32 %s123, 1
      %s125 = scalar_select %p122, %s123, %s124
      %p128 = pneg %p122
      %p129 = scmp.eq.s32.totalorder %s24, 1
      %p130 = por %p128, %p129
      %p131 = scmp.ne.s32.totalorder %s123, %s126
      %p132 = scmp.eq.s32.totalorder %s24, 0
      %p133 = por %p131, %p132
      %p134 = scmp.ne.s32.totalorder %s123, %s126
      %p135 = scmp.eq.s32.totalorder %s29, 1
      %p136 = por %p134, %p135
      %p137 = scmp.ne.s32.totalorder %s126, %s127
      %p138 = scmp.eq.s32.totalorder %s29, 0
      %p139 = por %p137, %p138
      %p140 = scmp.ne.s32.totalorder %s126, %s127
      %p141 = scmp.eq.s32.totalorder %s30, 1
      %p142 = por %p140, %p141
      %p144 = scmp.ne.s32.totalorder %s127, %s143
      %p145 = scmp.eq.s32.totalorder %s30, 0
      %p146 = por %p144, %p145
      %s147 = ssub.s32 %s24, %s31
      %p148 = scmp.eq.s32.totalorder %s147, 0
      %s150 = sadd.s32 %s149, 1
      %s151 = scalar_select %p148, %s149, %s150
      %p154 = pneg %p148
      %p155 = scmp.eq.s32.totalorder %s24, 1
      %p156 = por %p154, %p155
      %p157 = scmp.ne.s32.totalorder %s149, %s152
      %p158 = scmp.eq.s32.totalorder %s24, 0
      %p159 = por %p157, %p158
      %p160 = scmp.ne.s32.totalorder %s149, %s152
      %p161 = scmp.eq.s32.totalorder %s29, 1
      %p162 = por %p160, %p161
      %p163 = scmp.ne.s32.totalorder %s152, %s153
      %p164 = scmp.eq.s32.totalorder %s29, 0
      %p165 = por %p163, %p164
      %p166 = scmp.ne.s32.totalorder %s152, %s153
      %p167 = scmp.eq.s32.totalorder %s30, 1
      %p168 = por %p166, %p167
      %p170 = scmp.ne.s32.totalorder %s153, %s169
      %p171 = scmp.eq.s32.totalorder %s30, 0
      %p172 = por %p170, %p171
      %s173 = ssub.s32 %s24, %s31
      %p174 = scmp.eq.s32.totalorder %s173, 0
      %s176 = sadd.s32 %s175, 1
      %s177 = scalar_select %p174, %s175, %s176
      %p180 = pneg %p174
      %p181 = scmp.eq.s32.totalorder %s24, 1
      %p182 = por %p180, %p181
      %p183 = scmp.ne.s32.totalorder %s175, %s178
      %p184 = scmp.eq.s32.totalorder %s24, 0
      %p185 = por %p183, %p184
      %p186 = scmp.ne.s32.totalorder %s175, %s178
      %p187 = scmp.eq.s32.totalorder %s29, 1
      %p188 = por %p186, %p187
      %p189 = scmp.ne.s32.totalorder %s178, %s179
      %p190 = scmp.eq.s32.totalorder %s29, 0
      %p191 = por %p189, %p190
      %p192 = scmp.ne.s32.totalorder %s178, %s179
      %p193 = scmp.eq.s32.totalorder %s30, 1
      %p194 = por %p192, %p193
      %p196 = scmp.ne.s32.totalorder %s179, %s195
      %p197 = scmp.eq.s32.totalorder %s30, 0
      %p198 = por %p196, %p197
      %p199 = scmp.le.s32.totalorder 1, %s24
      %p200 = scmp.lt.s32.totalorder %s24, 3
      %p201 = pnand %p199, %p200
      %p202 = pneg %p201
      // Predicated region
      $region9: #{tpu_custom_call.1} parent=5 // pred_check
        _
      $region10: #{tpu_custom_call.1} parent=5 // pred_check_branch
        %204 = sbr.rel (%p201) target = $region12
      $region11: #{tpu_custom_call.1} parent=5 // pred_region
        %s205 = ssub.s32 %s24, 1
        // Predicated region
        $region13: #{tpu_custom_call.1} parent=11 // pred_check
          %p206 = pneg %p71
        $region14: #{tpu_custom_call.1} parent=11 // pred_check_branch
          %208 = sbr.rel (%p206) target = $region16
        $region15: #{tpu_custom_call.1} parent=11 // pred_region
          %210 = vsyncadd [#allocation6], 0
          %s211 = sshll.u32 %s1, 4
          %s212 = int_to_ptr.hbm [resolvable:$true] %s211
          %s213 = sshll.u32 [#allocation5], 4
          %s214 = int_to_ptr.vmem [resolvable:$true] %s213
          %219 = dma.hbm_to_vmem [thread:$0]  %s212, 1024, %s214, [#allocation6], 64, 64, 4
        $region16: #{tpu_custom_call.1} parent=11 // pred_fallthru
          _
        // Predicated region
        $region17: #{tpu_custom_call.1} parent=11 // pred_check
          %p220 = pneg %p92
        $region18: #{tpu_custom_call.1} parent=11 // pred_check_branch
          %222 = sbr.rel (%p220) target = $region20
        $region19: #{tpu_custom_call.1} parent=11 // pred_region
          %224 = vsyncadd [#allocation6], 0
          %s225 = sshll.u32 %s2, 4
          %s226 = int_to_ptr.hbm [resolvable:$true] %s225
          %s227 = sshll.u32 [#allocation7], 4
          %s228 = int_to_ptr.vmem [resolvable:$true] %s227
          %233 = dma.hbm_to_vmem [thread:$0]  %s226, 1024, %s228, [#allocation6], 64, 64, 4
        $region20: #{tpu_custom_call.1} parent=11 // pred_fallthru
          _
        // Predicated region
        $region21: #{tpu_custom_call.1} parent=11 // pred_check
          %p234 = pneg %p113
        $region22: #{tpu_custom_call.1} parent=11 // pred_check_branch
          %236 = sbr.rel (%p234) target = $region24
        $region23: #{tpu_custom_call.1} parent=11 // pred_region
          %238 = vsyncadd [#allocation9], 0
          %s239 = sshll.u32 %s3, 4
          %s240 = int_to_ptr.hbm [resolvable:$true] %s239
          %s241 = sshll.u32 [#allocation8], 4
          %s242 = int_to_ptr.vmem [resolvable:$true] %s241
          %247 = dma.hbm_to_vmem [thread:$0]  %s240, 1024, %s242, [#allocation9], 64, 64, 4
        $region24: #{tpu_custom_call.1} parent=11 // pred_fallthru
          _
      $region12: #{tpu_custom_call.1} parent=5 // pred_fallthru
        _
      %p248 = scmp.lt.s32.totalorder %s24, 2
      // Predicated region
      $region25: #{tpu_custom_call.1} parent=5 // pred_check
        %p249 = pneg %p248
      $region26: #{tpu_custom_call.1} parent=5 // pred_check_branch
        %251 = sbr.rel (%p249) target = $region28
      $region27: #{tpu_custom_call.1} parent=5 // pred_region
        // Predicated region
        $region29: #{tpu_custom_call.1} parent=27 // pred_check
          %p252 = pneg %p44
        $region30: #{tpu_custom_call.1} parent=27 // pred_check_branch
          %254 = sbr.rel (%p252) target = $region32
        $region31: #{tpu_custom_call.1} parent=27 // pred_region
          %s255 = sand.u32 %s34, 1
          %s256 = scalar_lea.sflag [#allocation3], %s255
          %s257 = sand.u32 %s34, 1
          %s258 = smul.addr %s257, 128
          %s259 = scalar_lea.vmem [#allocation2], %s258
          %s260 = smul.u32 16, %s24
          %262 = vsyncadd %s256, 0
          %s263 = smul.addr %s260, 8
          %s264 = scalar_lea.hbm %s0, %s263
          %s265 = sshll.u32 %s264, 4
          %s266 = int_to_ptr.hbm [resolvable:$true] %s265
          %s267 = sshll.u32 %s259, 4
          %s268 = int_to_ptr.vmem [resolvable:$true] %s267
          %273 = dma.hbm_to_vmem [thread:$0]  %s266, 2048, %s268, %s256, 128, 128, 8
        $region32: #{tpu_custom_call.1} parent=27 // pred_fallthru
          _
      $region28: #{tpu_custom_call.1} parent=5 // pred_fallthru
        _
      %p274 = scmp.le.s32.totalorder 1, %s24
      %p275 = scmp.lt.s32.totalorder %s24, 3
      %p276 = pnand %p274, %p275
      %p277 = pneg %p276
      // Predicated region
      $region33: #{tpu_custom_call.1} parent=5 // pred_check
        _
      $region34: #{tpu_custom_call.1} parent=5 // pred_check_branch
        %279 = sbr.rel (%p276) target = $region36
      $region35: #{tpu_custom_call.1} parent=5 // pred_region
        %s280 = ssub.s32 %s24, 1
        %s281 = sand.u32 %s37, 1
        %s282 = scalar_lea.sflag [#allocation3], %s281
        %s283 = sand.u32 %s37, 1
        %s284 = smul.addr %s283, 128
        %s285 = scalar_lea.vmem [#allocation2], %s284
        // Predicated region
        $region37: #{tpu_custom_call.1} parent=35 // pred_check
          %p286 = pneg %p50
        $region38: #{tpu_custom_call.1} parent=35 // pred_check_branch
          %288 = sbr.rel (%p286) target = $region40
        $region39: #{tpu_custom_call.1} parent=35 // pred_region
          %290 = dma.done %s282, 2048
        $region40: #{tpu_custom_call.1} parent=35 // pred_fallthru
          _
        // Predicated region
        $region41: #{tpu_custom_call.1} parent=35 // pred_check
          %p291 = pneg %p71
        $region42: #{tpu_custom_call.1} parent=35 // pred_check_branch
          %293 = sbr.rel (%p291) target = $region44
        $region43: #{tpu_custom_call.1} parent=35 // pred_region
          %295 = dma.done [#allocation6], 1024
        $region44: #{tpu_custom_call.1} parent=35 // pred_fallthru
          _
        // Predicated region
        $region45: #{tpu_custom_call.1} parent=35 // pred_check
          %p296 = pneg %p92
        $region46: #{tpu_custom_call.1} parent=35 // pred_check_branch
          %298 = sbr.rel (%p296) target = $region48
        $region47: #{tpu_custom_call.1} parent=35 // pred_region
          %300 = dma.done [#allocation6], 1024
        $region48: #{tpu_custom_call.1} parent=35 // pred_fallthru
          _
        // Predicated region
        $region49: #{tpu_custom_call.1} parent=35 // pred_check
          %p301 = pneg %p113
        $region50: #{tpu_custom_call.1} parent=35 // pred_check_branch
          %303 = sbr.rel (%p301) target = $region52
        $region51: #{tpu_custom_call.1} parent=35 // pred_region
          %305 = dma.done [#allocation9], 1024
        $region52: #{tpu_custom_call.1} parent=35 // pred_fallthru
          _
        %s306 = sand.u32 %s37, 1
        %s307 = scalar_lea.sflag [#allocation3], %s306
        %s308 = sand.u32 %s37, 1
        %s309 = smul.addr %s308, 128
        %s310 = scalar_lea.vmem [#allocation2], %s309
        %p311 = pneg %p50
        %p312 = pneg %p47
        %p313 = pneg %p71
        %p314 = pneg %p68
        %p315 = pneg %p92
        %p316 = pneg %p89
        %p317 = pneg %p113
        %p318 = pneg %p110
        %p319 = pneg %p139
        %p320 = pneg %p136
        %s321 = sand.u32 %s126, 1
        %s322 = scalar_lea.sflag [#allocation4], %s321
        %s323 = sand.u32 %s126, 1
        %s324 = smul.addr %s323, 64
        %s325 = scalar_lea.vmem [#allocation10], %s324
        %p326 = pneg %p165
        %p327 = pneg %p162
        %s328 = sand.u32 %s29, 1
        %s329 = scalar_lea.sflag [#allocation12], %s328
        %s330 = sand.u32 %s152, 1
        %s331 = smul.addr %s330, 64
        %s332 = scalar_lea.vmem [#allocation11], %s331
        %p333 = pneg %p191
        %p334 = pneg %p188
        %s335 = sand.u32 %s29, 1
        %s336 = scalar_lea.sflag [#allocation12], %s335
        %s337 = sand.u32 %s178, 1
        %s338 = smul.addr %s337, 64
        %s339 = scalar_lea.vmem [#allocation13], %s338
        %s340 = smul.u32 16, %s29
        %s341 = smul.u32 16, %s29
        %s342 = smul.u32 16, %s29
        %s343 = smul.u32 16, %s29
        %v344 = vld [vmem:[%s285] sm:$0xff]
        %v345 = vld [vmem:[%s285 + $0x8] sm:$0xff]
        %v346 = vld [vmem:[%s285 + $0x10] sm:$0xff]
        %v347 = vld [vmem:[%s285 + $0x18] sm:$0xff]
        %v348 = vld [vmem:[%s285 + $0x20] sm:$0xff]
        %v349 = vld [vmem:[%s285 + $0x28] sm:$0xff]
        %v350 = vld [vmem:[%s285 + $0x30] sm:$0xff]
        %v351 = vld [vmem:[%s285 + $0x38] sm:$0xff]
        %v352 = vld [vmem:[%s285 + $0x40] sm:$0xff]
        %v353 = vld [vmem:[%s285 + $0x48] sm:$0xff]
        %v354 = vld [vmem:[%s285 + $0x50] sm:$0xff]
        %v355 = vld [vmem:[%s285 + $0x58] sm:$0xff]
        %v356 = vld [vmem:[%s285 + $0x60] sm:$0xff]
        %v357 = vld [vmem:[%s285 + $0x68] sm:$0xff]
        %v358 = vld [vmem:[%s285 + $0x70] sm:$0xff]
        %v359 = vld [vmem:[%s285 + $0x78] sm:$0xff]
        %v360 = vpack.c.bf16 %v345, %v344
        %v361 = vpack.c.bf16 %v347, %v346
        %v362 = vpack.c.bf16 %v349, %v348
        %v363 = vpack.c.bf16 %v351, %v350
        %v364 = vpack.c.bf16 %v353, %v352
        %v365 = vpack.c.bf16 %v355, %v354
        %v366 = vpack.c.bf16 %v357, %v356
        %v367 = vpack.c.bf16 %v359, %v358
        %v368 = vld [vmem:[#allocation5] sm:$0xf]
        %v369 = vld [vmem:[#allocation5 + $0x4] sm:$0xf]
        %v370 = vld [vmem:[#allocation5 + $0x8] sm:$0xf]
        %v371 = vld [vmem:[#allocation5 + $0xc] sm:$0xf]
        %v372 = vld [vmem:[#allocation5 + $0x10] sm:$0xf]
        %v373 = vld [vmem:[#allocation5 + $0x14] sm:$0xf]
        %v374 = vld [vmem:[#allocation5 + $0x18] sm:$0xf]
        %v375 = vld [vmem:[#allocation5 + $0x1c] sm:$0xf]
        %v376 = vld [vmem:[#allocation5 + $0x20] sm:$0xf]
        %v377 = vld [vmem:[#allocation5 + $0x24] sm:$0xf]
        %v378 = vld [vmem:[#allocation5 + $0x28] sm:$0xf]
        %v379 = vld [vmem:[#allocation5 + $0x2c] sm:$0xf]
        %v380 = vld [vmem:[#allocation5 + $0x30] sm:$0xf]
        %v381 = vld [vmem:[#allocation5 + $0x34] sm:$0xf]
        %v382 = vld [vmem:[#allocation5 + $0x38] sm:$0xf]
        %v383 = vld [vmem:[#allocation5 + $0x3c] sm:$0xf]
        %v400 = vunpack.c.l.b16 %v368
        %v401 = vunpack.c.l.b16 %v369
        %v402 = vunpack.c.l.b16 %v370
        %v403 = vunpack.c.l.b16 %v371
        %v404 = vunpack.c.l.b16 %v372
        %v405 = vunpack.c.l.b16 %v373
        %v406 = vunpack.c.l.b16 %v374
        %v407 = vunpack.c.l.b16 %v375
        %v408 = vunpack.c.l.b16 %v376
        %v409 = vunpack.c.l.b16 %v377
        %v410 = vunpack.c.l.b16 %v378
        %v411 = vunpack.c.l.b16 %v379
        %v412 = vunpack.c.l.b16 %v380
        %v413 = vunpack.c.l.b16 %v381
        %v414 = vunpack.c.l.b16 %v382
        %v415 = vunpack.c.l.b16 %v383
        %v416 = vpack.c.b16 %v401, %v400
        %v417 = vpack.c.b16 %v403, %v402
        %v418 = vpack.c.b16 %v405, %v404
        %v419 = vpack.c.b16 %v407, %v406
        %v420 = vpack.c.b16 %v409, %v408
        %v421 = vpack.c.b16 %v411, %v410
        %v422 = vpack.c.b16 %v413, %v412
        %v423 = vpack.c.b16 %v415, %v414
        %432 = vmatpush.bf16.xpose.msra.mxu0 %v423
        %433 = vmatpush.bf16.xpose.msra.mxu0 %v422
        %434 = vmatpush.bf16.xpose.msra.mxu0 %v421
        %435 = vmatpush.bf16.xpose.msra.mxu0 %v420
        %436 = vmatpush.bf16.xpose.msra.mxu0 %v419
        %437 = vmatpush.bf16.xpose.msra.mxu0 %v418
        %438 = vmatpush.bf16.xpose.msra.mxu0 %v417
        %439 = vmatpush.bf16.xpose.msra.mxu0 %v416
        %440 = vmatmul.bf16.gmra.mxu0 %v360
        %v441 = vpop.f32.mrf.mxu0
        %v442 = vadd.f32 0.0, %v441
        %v443 = vpop.f32.mrf.mxu0
        %v444 = vadd.f32 0.0, %v443
        %445 = vmatmul.bf16.gmra.mxu0 %v361
        %v446 = vpop.f32.mrf.mxu0
        %v447 = vadd.f32 0.0, %v446
        %v448 = vpop.f32.mrf.mxu0
        %v449 = vadd.f32 0.0, %v448
        %450 = vmatmul.bf16.gmra.mxu0 %v362
        %v451 = vpop.f32.mrf.mxu0
        %v452 = vadd.f32 0.0, %v451
        %v453 = vpop.f32.mrf.mxu0
        %v454 = vadd.f32 0.0, %v453
        %455 = vmatmul.bf16.gmra.mxu0 %v363
        %v456 = vpop.f32.mrf.mxu0
        %v457 = vadd.f32 0.0, %v456
        %v458 = vpop.f32.mrf.mxu0
        %v459 = vadd.f32 0.0, %v458
        %460 = vmatmul.bf16.gmra.mxu0 %v364
        %v461 = vpop.f32.mrf.mxu0
        %v462 = vadd.f32 0.0, %v461
        %v463 = vpop.f32.mrf.mxu0
        %v464 = vadd.f32 0.0, %v463
        %465 = vmatmul.bf16.gmra.mxu0 %v365
        %v466 = vpop.f32.mrf.mxu0
        %v467 = vadd.f32 0.0, %v466
        %v468 = vpop.f32.mrf.mxu0
        %v469 = vadd.f32 0.0, %v468
        %470 = vmatmul.bf16.gmra.mxu0 %v366
        %v471 = vpop.f32.mrf.mxu0
        %v472 = vadd.f32 0.0, %v471
        %v473 = vpop.f32.mrf.mxu0
        %v474 = vadd.f32 0.0, %v473
        %475 = vmatmul.bf16.gmra.mxu0 %v367
        %v476 = vpop.f32.mrf.mxu0
        %v477 = vadd.f32 0.0, %v476
        %v478 = vpop.f32.mrf.mxu0
        %v479 = vadd.f32 0.0, %v478
        %480 = vdwg.mxu0
        %v481 = vld [vmem:[#allocation7] sm:$0xf]
        %v482 = vld [vmem:[#allocation7 + $0x4] sm:$0xf]
        %v483 = vld [vmem:[#allocation7 + $0x8] sm:$0xf]
        %v484 = vld [vmem:[#allocation7 + $0xc] sm:$0xf]
        %v485 = vld [vmem:[#allocation7 + $0x10] sm:$0xf]
        %v486 = vld [vmem:[#allocation7 + $0x14] sm:$0xf]
        %v487 = vld [vmem:[#allocation7 + $0x18] sm:$0xf]
        %v488 = vld [vmem:[#allocation7 + $0x1c] sm:$0xf]
        %v489 = vld [vmem:[#allocation7 + $0x20] sm:$0xf]
        %v490 = vld [vmem:[#allocation7 + $0x24] sm:$0xf]
        %v491 = vld [vmem:[#allocation7 + $0x28] sm:$0xf]
        %v492 = vld [vmem:[#allocation7 + $0x2c] sm:$0xf]
        %v493 = vld [vmem:[#allocation7 + $0x30] sm:$0xf]
        %v494 = vld [vmem:[#allocation7 + $0x34] sm:$0xf]
        %v495 = vld [vmem:[#allocation7 + $0x38] sm:$0xf]
        %v496 = vld [vmem:[#allocation7 + $0x3c] sm:$0xf]
        %v513 = vunpack.c.l.b16 %v481
        %v514 = vunpack.c.l.b16 %v482
        %v515 = vunpack.c.l.b16 %v483
        %v516 = vunpack.c.l.b16 %v484
        %v517 = vunpack.c.l.b16 %v485
        %v518 = vunpack.c.l.b16 %v486
        %v519 = vunpack.c.l.b16 %v487
        %v520 = vunpack.c.l.b16 %v488
        %v521 = vunpack.c.l.b16 %v489
        %v522 = vunpack.c.l.b16 %v490
        %v523 = vunpack.c.l.b16 %v491
        %v524 = vunpack.c.l.b16 %v492
        %v525 = vunpack.c.l.b16 %v493
        %v526 = vunpack.c.l.b16 %v494
        %v527 = vunpack.c.l.b16 %v495
        %v528 = vunpack.c.l.b16 %v496
        %v529 = vpack.c.b16 %v514, %v513
        %v530 = vpack.c.b16 %v516, %v515
        %v531 = vpack.c.b16 %v518, %v517
        %v532 = vpack.c.b16 %v520, %v519
        %v533 = vpack.c.b16 %v522, %v521
        %v534 = vpack.c.b16 %v524, %v523
        %v535 = vpack.c.b16 %v526, %v525
        %v536 = vpack.c.b16 %v528, %v527
        %545 = vmatpush.bf16.xpose.msra.mxu0 %v536
        %546 = vmatpush.bf16.xpose.msra.mxu0 %v535
        %547 = vmatpush.bf16.xpose.msra.mxu0 %v534
        %548 = vmatpush.bf16.xpose.msra.mxu0 %v533
        %549 = vmatpush.bf16.xpose.msra.mxu0 %v532
        %550 = vmatpush.bf16.xpose.msra.mxu0 %v531
        %551 = vmatpush.bf16.xpose.msra.mxu0 %v530
        %552 = vmatpush.bf16.xpose.msra.mxu0 %v529
        %553 = vmatmul.bf16.gmra.mxu0 %v360
        %v554 = vpop.f32.mrf.mxu0
        %v555 = vadd.f32 0.0, %v554
        %v556 = vpop.f32.mrf.mxu0
        %v557 = vadd.f32 0.0, %v556
        %558 = vmatmul.bf16.gmra.mxu0 %v361
        %v559 = vpop.f32.mrf.mxu0
        %v560 = vadd.f32 0.0, %v559
        %v561 = vpop.f32.mrf.mxu0
        %v562 = vadd.f32 0.0, %v561
        %563 = vmatmul.bf16.gmra.mxu0 %v362
        %v564 = vpop.f32.mrf.mxu0
        %v565 = vadd.f32 0.0, %v564
        %v566 = vpop.f32.mrf.mxu0
        %v567 = vadd.f32 0.0, %v566
        %568 = vmatmul.bf16.gmra.mxu0 %v363
        %v569 = vpop.f32.mrf.mxu0
        %v570 = vadd.f32 0.0, %v569
        %v571 = vpop.f32.mrf.mxu0
        %v572 = vadd.f32 0.0, %v571
        %573 = vmatmul.bf16.gmra.mxu0 %v364
        %v574 = vpop.f32.mrf.mxu0
        %v575 = vadd.f32 0.0, %v574
        %v576 = vpop.f32.mrf.mxu0
        %v577 = vadd.f32 0.0, %v576
        %578 = vmatmul.bf16.gmra.mxu0 %v365
        %v579 = vpop.f32.mrf.mxu0
        %v580 = vadd.f32 0.0, %v579
        %v581 = vpop.f32.mrf.mxu0
        %v582 = vadd.f32 0.0, %v581
        %583 = vmatmul.bf16.gmra.mxu0 %v366
        %v584 = vpop.f32.mrf.mxu0
        %v585 = vadd.f32 0.0, %v584
        %v586 = vpop.f32.mrf.mxu0
        %v587 = vadd.f32 0.0, %v586
        %588 = vmatmul.bf16.gmra.mxu0 %v367
        %v589 = vpop.f32.mrf.mxu0
        %v590 = vadd.f32 0.0, %v589
        %v591 = vpop.f32.mrf.mxu0
        %v592 = vadd.f32 0.0, %v591
        %593 = vdwg.mxu0
        %v594 = vld [vmem:[#allocation8] sm:$0xf]
        %v595 = vld [vmem:[#allocation8 + $0x4] sm:$0xf]
        %v596 = vld [vmem:[#allocation8 + $0x8] sm:$0xf]
        %v597 = vld [vmem:[#allocation8 + $0xc] sm:$0xf]
        %v598 = vld [vmem:[#allocation8 + $0x10] sm:$0xf]
        %v599 = vld [vmem:[#allocation8 + $0x14] sm:$0xf]
        %v600 = vld [vmem:[#allocation8 + $0x18] sm:$0xf]
        %v601 = vld [vmem:[#allocation8 + $0x1c] sm:$0xf]
        %v602 = vld [vmem:[#allocation8 + $0x20] sm:$0xf]
        %v603 = vld [vmem:[#allocation8 + $0x24] sm:$0xf]
        %v604 = vld [vmem:[#allocation8 + $0x28] sm:$0xf]
        %v605 = vld [vmem:[#allocation8 + $0x2c] sm:$0xf]
        %v606 = vld [vmem:[#allocation8 + $0x30] sm:$0xf]
        %v607 = vld [vmem:[#allocation8 + $0x34] sm:$0xf]
        %v608 = vld [vmem:[#allocation8 + $0x38] sm:$0xf]
        %v609 = vld [vmem:[#allocation8 + $0x3c] sm:$0xf]
        %v626 = vunpack.c.l.b16 %v594
        %v627 = vunpack.c.l.b16 %v595
        %v628 = vunpack.c.l.b16 %v596
        %v629 = vunpack.c.l.b16 %v597
        %v630 = vunpack.c.l.b16 %v598
        %v631 = vunpack.c.l.b16 %v599
        %v632 = vunpack.c.l.b16 %v600
        %v633 = vunpack.c.l.b16 %v601
        %v634 = vunpack.c.l.b16 %v602
        %v635 = vunpack.c.l.b16 %v603
        %v636 = vunpack.c.l.b16 %v604
        %v637 = vunpack.c.l.b16 %v605
        %v638 = vunpack.c.l.b16 %v606
        %v639 = vunpack.c.l.b16 %v607
        %v640 = vunpack.c.l.b16 %v608
        %v641 = vunpack.c.l.b16 %v609
        %v642 = vpack.c.b16 %v627, %v626
        %v643 = vpack.c.b16 %v629, %v628
        %v644 = vpack.c.b16 %v631, %v630
        %v645 = vpack.c.b16 %v633, %v632
        %v646 = vpack.c.b16 %v635, %v634
        %v647 = vpack.c.b16 %v637, %v636
        %v648 = vpack.c.b16 %v639, %v638
        %v649 = vpack.c.b16 %v641, %v640
        %658 = vmatpush.bf16.xpose.msra.mxu0 %v649
        %659 = vmatpush.bf16.xpose.msra.mxu0 %v648
        %660 = vmatpush.bf16.xpose.msra.mxu0 %v647
        %661 = vmatpush.bf16.xpose.msra.mxu0 %v646
        %662 = vmatpush.bf16.xpose.msra.mxu0 %v645
        %663 = vmatpush.bf16.xpose.msra.mxu0 %v644
        %664 = vmatpush.bf16.xpose.msra.mxu0 %v643
        %665 = vmatpush.bf16.xpose.msra.mxu0 %v642
        %666 = vmatmul.bf16.gmra.mxu0 %v360
        %v667 = vpop.f32.mrf.mxu0
        %v668 = vadd.f32 0.0, %v667
        %v669 = vpop.f32.mrf.mxu0
        %v670 = vadd.f32 0.0, %v669
        %671 = vmatmul.bf16.gmra.mxu0 %v361
        %v672 = vpop.f32.mrf.mxu0
        %v673 = vadd.f32 0.0, %v672
        %v674 = vpop.f32.mrf.mxu0
        %v675 = vadd.f32 0.0, %v674
        %676 = vmatmul.bf16.gmra.mxu0 %v362
        %v677 = vpop.f32.mrf.mxu0
        %v678 = vadd.f32 0.0, %v677
        %v679 = vpop.f32.mrf.mxu0
        %v680 = vadd.f32 0.0, %v679
        %681 = vmatmul.bf16.gmra.mxu0 %v363
        %v682 = vpop.f32.mrf.mxu0
        %v683 = vadd.f32 0.0, %v682
        %v684 = vpop.f32.mrf.mxu0
        %v685 = vadd.f32 0.0, %v684
        %686 = vmatmul.bf16.gmra.mxu0 %v364
        %v687 = vpop.f32.mrf.mxu0
        %v688 = vadd.f32 0.0, %v687
        %v689 = vpop.f32.mrf.mxu0
        %v690 = vadd.f32 0.0, %v689
        %691 = vmatmul.bf16.gmra.mxu0 %v365
        %v692 = vpop.f32.mrf.mxu0
        %v693 = vadd.f32 0.0, %v692
        %v694 = vpop.f32.mrf.mxu0
        %v695 = vadd.f32 0.0, %v694
        %696 = vmatmul.bf16.gmra.mxu0 %v366
        %v697 = vpop.f32.mrf.mxu0
        %v698 = vadd.f32 0.0, %v697
        %v699 = vpop.f32.mrf.mxu0
        %v700 = vadd.f32 0.0, %v699
        %701 = vmatmul.bf16.gmra.mxu0 %v367
        %v702 = vpop.f32.mrf.mxu0
        %v703 = vadd.f32 0.0, %v702
        %v704 = vpop.f32.mrf.mxu0
        %v705 = vadd.f32 0.0, %v704
        %706 = vdwg.mxu0
        %v707 = vmul.f32 %v442, 0.088388346
        %v708 = vmul.f32 %v444, 0.088388346
        %v709 = vmul.f32 %v447, 0.088388346
        %v710 = vmul.f32 %v449, 0.088388346
        %v711 = vmul.f32 %v452, 0.088388346
        %v712 = vmul.f32 %v454, 0.088388346
        %v713 = vmul.f32 %v457, 0.088388346
        %v714 = vmul.f32 %v459, 0.088388346
        %v715 = vmul.f32 %v462, 0.088388346
        %v716 = vmul.f32 %v464, 0.088388346
        %v717 = vmul.f32 %v467, 0.088388346
        %v718 = vmul.f32 %v469, 0.088388346
        %v719 = vmul.f32 %v472, 0.088388346
        %v720 = vmul.f32 %v474, 0.088388346
        %v721 = vmul.f32 %v477, 0.088388346
        %v722 = vmul.f32 %v479, 0.088388346
        %v723 = vpack.c.bf16 %v707, %v707
        %v724 = vpack.c.bf16 %v708, %v708
        %v725 = vpack.c.bf16 %v709, %v709
        %v726 = vpack.c.bf16 %v710, %v710
        %v727 = vpack.c.bf16 %v711, %v711
        %v728 = vpack.c.bf16 %v712, %v712
        %v729 = vpack.c.bf16 %v713, %v713
        %v730 = vpack.c.bf16 %v714, %v714
        %v731 = vpack.c.bf16 %v715, %v715
        %v732 = vpack.c.bf16 %v716, %v716
        %v733 = vpack.c.bf16 %v717, %v717
        %v734 = vpack.c.bf16 %v718, %v718
        %v735 = vpack.c.bf16 %v719, %v719
        %v736 = vpack.c.bf16 %v720, %v720
        %v737 = vpack.c.bf16 %v721, %v721
        %v738 = vpack.c.bf16 %v722, %v722
        %739 = vst [vmem:[%s325] sm:$0xf] %v723
        %740 = vst [vmem:[%s325 + $0x4] sm:$0xf] %v724
        %741 = vst [vmem:[%s325 + $0x8] sm:$0xf] %v725
        %742 = vst [vmem:[%s325 + $0xc] sm:$0xf] %v726
        %743 = vst [vmem:[%s325 + $0x10] sm:$0xf] %v727
        %744 = vst [vmem:[%s325 + $0x14] sm:$0xf] %v728
        %745 = vst [vmem:[%s325 + $0x18] sm:$0xf] %v729
        %746 = vst [vmem:[%s325 + $0x1c] sm:$0xf] %v730
        %747 = vst [vmem:[%s325 + $0x20] sm:$0xf] %v731
        %748 = vst [vmem:[%s325 + $0x24] sm:$0xf] %v732
        %749 = vst [vmem:[%s325 + $0x28] sm:$0xf] %v733
        %750 = vst [vmem:[%s325 + $0x2c] sm:$0xf] %v734
        %751 = vst [vmem:[%s325 + $0x30] sm:$0xf] %v735
        %752 = vst [vmem:[%s325 + $0x34] sm:$0xf] %v736
        %753 = vst [vmem:[%s325 + $0x38] sm:$0xf] %v737
        %754 = vst [vmem:[%s325 + $0x3c] sm:$0xf] %v738
        %v755 = vpack.c.bf16 %v555, %v555
        %v756 = vpack.c.bf16 %v557, %v557
        %v757 = vpack.c.bf16 %v560, %v560
        %v758 = vpack.c.bf16 %v562, %v562
        %v759 = vpack.c.bf16 %v565, %v565
        %v760 = vpack.c.bf16 %v567, %v567
        %v761 = vpack.c.bf16 %v570, %v570
        %v762 = vpack.c.bf16 %v572, %v572
        %v763 = vpack.c.bf16 %v575, %v575
        %v764 = vpack.c.bf16 %v577, %v577
        %v765 = vpack.c.bf16 %v580, %v580
        %v766 = vpack.c.bf16 %v582, %v582
        %v767 = vpack.c.bf16 %v585, %v585
        %v768 = vpack.c.bf16 %v587, %v587
        %v769 = vpack.c.bf16 %v590, %v590
        %v770 = vpack.c.bf16 %v592, %v592
        %771 = vst [vmem:[%s332] sm:$0xf] %v755
        %772 = vst [vmem:[%s332 + $0x4] sm:$0xf] %v756
        %773 = vst [vmem:[%s332 + $0x8] sm:$0xf] %v757
        %774 = vst [vmem:[%s332 + $0xc] sm:$0xf] %v758
        %775 = vst [vmem:[%s332 + $0x10] sm:$0xf] %v759
        %776 = vst [vmem:[%s332 + $0x14] sm:$0xf] %v760
        %777 = vst [vmem:[%s332 + $0x18] sm:$0xf] %v761
        %778 = vst [vmem:[%s332 + $0x1c] sm:$0xf] %v762
        %779 = vst [vmem:[%s332 + $0x20] sm:$0xf] %v763
        %780 = vst [vmem:[%s332 + $0x24] sm:$0xf] %v764
        %781 = vst [vmem:[%s332 + $0x28] sm:$0xf] %v765
        %782 = vst [vmem:[%s332 + $0x2c] sm:$0xf] %v766
        %783 = vst [vmem:[%s332 + $0x30] sm:$0xf] %v767
        %784 = vst [vmem:[%s332 + $0x34] sm:$0xf] %v768
        %785 = vst [vmem:[%s332 + $0x38] sm:$0xf] %v769
        %786 = vst [vmem:[%s332 + $0x3c] sm:$0xf] %v770
        %v787 = vpack.c.bf16 %v668, %v668
        %v788 = vpack.c.bf16 %v670, %v670
        %v789 = vpack.c.bf16 %v673, %v673
        %v790 = vpack.c.bf16 %v675, %v675
        %v791 = vpack.c.bf16 %v678, %v678
        %v792 = vpack.c.bf16 %v680, %v680
        %v793 = vpack.c.bf16 %v683, %v683
        %v794 = vpack.c.bf16 %v685, %v685
        %v795 = vpack.c.bf16 %v688, %v688
        %v796 = vpack.c.bf16 %v690, %v690
        %v797 = vpack.c.bf16 %v693, %v693
        %v798 = vpack.c.bf16 %v695, %v695
        %v799 = vpack.c.bf16 %v698, %v698
        %v800 = vpack.c.bf16 %v700, %v700
        %v801 = vpack.c.bf16 %v703, %v703
        %v802 = vpack.c.bf16 %v705, %v705
        %803 = vst [vmem:[%s339] sm:$0xf] %v787
        %804 = vst [vmem:[%s339 + $0x4] sm:$0xf] %v788
        %805 = vst [vmem:[%s339 + $0x8] sm:$0xf] %v789
        %806 = vst [vmem:[%s339 + $0xc] sm:$0xf] %v790
        %807 = vst [vmem:[%s339 + $0x10] sm:$0xf] %v791
        %808 = vst [vmem:[%s339 + $0x14] sm:$0xf] %v792
        %809 = vst [vmem:[%s339 + $0x18] sm:$0xf] %v793
        %810 = vst [vmem:[%s339 + $0x1c] sm:$0xf] %v794
        %811 = vst [vmem:[%s339 + $0x20] sm:$0xf] %v795
        %812 = vst [vmem:[%s339 + $0x24] sm:$0xf] %v796
        %813 = vst [vmem:[%s339 + $0x28] sm:$0xf] %v797
        %814 = vst [vmem:[%s339 + $0x2c] sm:$0xf] %v798
        %815 = vst [vmem:[%s339 + $0x30] sm:$0xf] %v799
        %816 = vst [vmem:[%s339 + $0x34] sm:$0xf] %v800
        %817 = vst [vmem:[%s339 + $0x38] sm:$0xf] %v801
        %818 = vst [vmem:[%s339 + $0x3c] sm:$0xf] %v802
        %s819 = sand.u32 %s126, 1
        %s820 = scalar_lea.sflag [#allocation4], %s819
        %s821 = sand.u32 %s126, 1
        %s822 = smul.addr %s821, 64
        %s823 = scalar_lea.vmem [#allocation10], %s822
        %s824 = sand.u32 %s29, 1
        %s825 = scalar_lea.sflag [#allocation12], %s824
        %s826 = sand.u32 %s152, 1
        %s827 = smul.addr %s826, 64
        %s828 = scalar_lea.vmem [#allocation11], %s827
        %s829 = sand.u32 %s29, 1
        %s830 = scalar_lea.sflag [#allocation12], %s829
        %s831 = sand.u32 %s178, 1
        %s832 = smul.addr %s831, 64
        %s833 = scalar_lea.vmem [#allocation13], %s832
        // Predicated region
        $region53: #{tpu_custom_call.1} parent=35 // pred_check
          %p834 = pneg %p136
        $region54: #{tpu_custom_call.1} parent=35 // pred_check_branch
          %836 = sbr.rel (%p834) target = $region56
        $region55: #{tpu_custom_call.1} parent=35 // pred_region
          %s837 = smul.u32 16, %s29
          %839 = vsyncadd %s820, 0
          %s840 = smul.addr %s837, 4
          %s841 = scalar_lea.hbm %s4, %s840
          %s842 = sshll.u32 %s823, 4
          %s843 = int_to_ptr.vmem [resolvable:$true] %s842
          %s844 = sshll.u32 %s841, 4
          %s845 = int_to_ptr.hbm [resolvable:$true] %s844
          %850 = dma.vmem_to_hbm [thread:$0]  %s843, 1024, %s845, %s820, 64, 64, 4
        $region56: #{tpu_custom_call.1} parent=35 // pred_fallthru
          _
        // Predicated region
        $region57: #{tpu_custom_call.1} parent=35 // pred_check
          %p851 = pneg %p162
        $region58: #{tpu_custom_call.1} parent=35 // pred_check_branch
          %853 = sbr.rel (%p851) target = $region60
        $region59: #{tpu_custom_call.1} parent=35 // pred_region
          %s854 = smul.u32 16, %s29
          %856 = vsyncadd %s825, 0
          %s857 = smul.addr %s854, 4
          %s858 = scalar_lea.hbm %s5, %s857
          %s859 = sshll.u32 %s828, 4
          %s860 = int_to_ptr.vmem [resolvable:$true] %s859
          %s861 = sshll.u32 %s858, 4
          %s862 = int_to_ptr.hbm [resolvable:$true] %s861
          %867 = dma.vmem_to_hbm [thread:$0]  %s860, 1024, %s862, %s825, 64, 64, 4
        $region60: #{tpu_custom_call.1} parent=35 // pred_fallthru
          _
        // Predicated region
        $region61: #{tpu_custom_call.1} parent=35 // pred_check
          %p868 = pneg %p188
        $region62: #{tpu_custom_call.1} parent=35 // pred_check_branch
          %870 = sbr.rel (%p868) target = $region64
        $region63: #{tpu_custom_call.1} parent=35 // pred_region
          %s871 = smul.u32 16, %s29
          %873 = vsyncadd %s830, 0
          %s874 = smul.addr %s871, 4
          %s875 = scalar_lea.hbm %s6, %s874
          %s876 = sshll.u32 %s833, 4
          %s877 = int_to_ptr.vmem [resolvable:$true] %s876
          %s878 = sshll.u32 %s875, 4
          %s879 = int_to_ptr.hbm [resolvable:$true] %s878
          %884 = dma.vmem_to_hbm [thread:$0]  %s877, 1024, %s879, %s830, 64, 64, 4
        $region64: #{tpu_custom_call.1} parent=35 // pred_fallthru
          _
      $region36: #{tpu_custom_call.1} parent=5 // pred_fallthru
        _
      %p885 = scmp.le.s32.totalorder 2, %s24
      // Predicated region
      $region65: #{tpu_custom_call.1} parent=5 // pred_check
        %p886 = pneg %p885
      $region66: #{tpu_custom_call.1} parent=5 // pred_check_branch
        %888 = sbr.rel (%p886) target = $region68
      $region67: #{tpu_custom_call.1} parent=5 // pred_region
        %s889 = ssub.s32 %s24, 2
        // Predicated region
        $region69: #{tpu_custom_call.1} parent=67 // pred_check
          %p890 = pneg %p142
        $region70: #{tpu_custom_call.1} parent=67 // pred_check_branch
          %892 = sbr.rel (%p890) target = $region72
        $region71: #{tpu_custom_call.1} parent=67 // pred_region
          %s893 = sand.u32 %s127, 1
          %s894 = scalar_lea.sflag [#allocation4], %s893
          %s895 = sand.u32 %s127, 1
          %s896 = smul.addr %s895, 64
          %s897 = scalar_lea.vmem [#allocation10], %s896
          %899 = dma.done %s894, 1024
        $region72: #{tpu_custom_call.1} parent=67 // pred_fallthru
          _
        // Predicated region
        $region73: #{tpu_custom_call.1} parent=67 // pred_check
          %p900 = pneg %p168
        $region74: #{tpu_custom_call.1} parent=67 // pred_check_branch
          %902 = sbr.rel (%p900) target = $region76
        $region75: #{tpu_custom_call.1} parent=67 // pred_region
          %s903 = sand.u32 %s30, 1
          %s904 = scalar_lea.sflag [#allocation12], %s903
          %s905 = sand.u32 %s153, 1
          %s906 = smul.addr %s905, 64
          %s907 = scalar_lea.vmem [#allocation11], %s906
          %909 = dma.done %s904, 1024
        $region76: #{tpu_custom_call.1} parent=67 // pred_fallthru
          _
        // Predicated region
        $region77: #{tpu_custom_call.1} parent=67 // pred_check
          %p910 = pneg %p194
        $region78: #{tpu_custom_call.1} parent=67 // pred_check_branch
          %912 = sbr.rel (%p910) target = $region80
        $region79: #{tpu_custom_call.1} parent=67 // pred_region
          %s913 = sand.u32 %s30, 1
          %s914 = scalar_lea.sflag [#allocation12], %s913
          %s915 = sand.u32 %s179, 1
          %s916 = smul.addr %s915, 64
          %s917 = scalar_lea.vmem [#allocation13], %s916
          %919 = dma.done %s914, 1024
        $region80: #{tpu_custom_call.1} parent=67 // pred_fallthru
          _
      $region68: #{tpu_custom_call.1} parent=5 // pred_fallthru
        _
    $region6: #{tpu_custom_call.1} parent=1 // loop_footer
      %s28 = sadd.s32 1, %s24
    $region7: #{tpu_custom_call.1} parent=1 // loop_footer_branch
      %23 = sbr.rel target = $region3
    $region8: #{tpu_custom_call.1} parent=1 // loop_exit
      _
    %920 = vsyncpa [#allocation3], 1
    %s921 = scalar_lea.sflag [#allocation3], 1
    %922 = vsyncpa %s921, 1
    %923 = vsyncpa [#allocation6], 1
    %924 = vsyncpa [#allocation9], 1
    %925 = vsyncpa [#allocation4], 1
    %s926 = scalar_lea.sflag [#allocation4], 1
    %927 = vsyncpa %s926, 1
    %928 = vsyncpa [#allocation12], 1
    %s929 = scalar_lea.sflag [#allocation12], 1
    %930 = vsyncpa %s929, 1

</llo_original>
